<compile_context>
chip_gen: v7x
topology: tpu7x:2x2x1
jax: 0.10.0
libtpu: 0.0.40
codegen_flags: <defaults>
</compile_context>

<pallas_src>
import math
from functools import partial

import jax
import jax.numpy as jnp
from jax.experimental import pallas as pl
from jax.experimental.pallas import tpu as pltpu


_TARGET_BLOCK_BYTES = 4 << 20   # ~4 MiB blocks: amortizes ~0.35 us/step overhead
_VMEM_CAP_BYTES = 48 << 20      # safe on v5e/v6e (128 MiB) and v7x (64 MiB)


# ----------------------------------------------------------------------------
# Kernels
# ----------------------------------------------------------------------------
def _radix_softmax_lane_kernel(x_ref, o_ref, *, radix, ch):
    """Softmax over `radix` contiguous lane chunks of width `ch` (128-aligned).

    x_ref/o_ref: (TG, radix*ch). The reduction is unrolled over static
    128-aligned lane slices, so it is pure VPU elementwise work.
    """
    x = x_ref[...].astype(jnp.float32)
    m = x[:, 0:ch]
    for r in range(1, radix):
        m = jnp.maximum(m, x[:, r * ch:(r + 1) * ch])
    exps = []
    s = None
    for r in range(radix):
        e = jnp.exp(x[:, r * ch:(r + 1) * ch] - m)
        exps.append(e)
        s = e if s is None else s + e
    inv = pl.reciprocal(s, approx=True)          # EUP; keeps VALU free
    y = jnp.concatenate([e * inv for e in exps], axis=1)
    o_ref[...] = y.astype(o_ref.dtype)


def _radix_softmax_3d_kernel(x_ref, o_ref):
    """Fallback for ch not a multiple of 128: (TG, radix, ch), softmax axis=1."""
    x = x_ref[...].astype(jnp.float32)
    m = jnp.max(x, axis=1, keepdims=True)
    e = jnp.exp(x - m)
    s = jnp.sum(e, axis=1, keepdims=True)
    o_ref[...] = (e * pl.reciprocal(s, approx=True)).astype(o_ref.dtype)


def _sigmoid_kernel(x_ref, o_ref):
    x = x_ref[...].astype(jnp.float32)
    o_ref[...] = pl.reciprocal(1.0 + jnp.exp(-x), approx=True).astype(o_ref.dtype)


# ----------------------------------------------------------------------------
# Tiling helpers
# ----------------------------------------------------------------------------
def _pick_row_tile(num_rows, row_bytes, target_bytes=_TARGET_BLOCK_BYTES,
                   prefer_min_steps=2):
    """Largest sublane-friendly leading-dim tile within the byte budget.

    Prefers >= `prefer_min_steps` grid steps (v7x: 2 TensorCores with
    dimension_semantics='parallel') whenever that still leaves >=8 rows/tile.
    """
    t = max(1, min(num_rows, target_bytes // max(row_bytes, 1)))
    if prefer_min_steps > 1 and num_rows >= 8 * prefer_min_steps:
        t = min(t, pl.cdiv(num_rows, prefer_min_steps))
    if t < num_rows:
        t = max(8, (t // 8) * 8)          # keep the (8, 128) sublane constraint
        t = min(t, num_rows)
    return t


def _vmem_limit(io_block_bytes, f32_block_elems, pad_factor=1.0):
    """Scoped VMEM budget.

    2 double-buffered copies each of the input and output block (4x io block,
    scaled by any sublane padding of the block layout) + ~3 f32-sized compute
    temporaries (upcast x, exp, running sums) + fixed headroom.
    """
    budget = int(4 * io_block_bytes * pad_factor
                 + 3 * 4 * f32_block_elems
                 + (8 << 20))
    return int(min(_VMEM_CAP_BYTES, max(16 << 20, budget)))


# ----------------------------------------------------------------------------
# pallas_call wrappers
# ----------------------------------------------------------------------------
def _radix_softmax_call_2d(x2, radix, ch):
    """x2: (groups, radix*ch), ch % 128 == 0. Lane-dense fast path."""
    g, w = x2.shape
    row_bytes = w * x2.dtype.itemsize
    tg = _pick_row_tile(g, row_bytes)
    limit = _vmem_limit(tg * row_bytes, tg * w)
    return pl.pallas_call(
        partial(_radix_softmax_lane_kernel, radix=radix, ch=ch),
        out_shape=jax.ShapeDtypeStruct((g, w), x2.dtype),
        grid=(pl.cdiv(g, tg),),
        in_specs=[pl.BlockSpec((tg, w), lambda i: (i, 0))],
        out_specs=pl.BlockSpec((tg, w), lambda i: (i, 0)),
        compiler_params=pltpu.CompilerParams(
            dimension_semantics=("parallel",),
            vmem_limit_bytes=limit,
        ),
    )(x2)


def _radix_softmax_call_3d(xr):
    """xr: (groups, radix, ch) fallback when ch % 128 != 0."""
    g, radix, ch = xr.shape
    row_bytes = radix * ch * xr.dtype.itemsize
    tg = _pick_row_tile(g, row_bytes)
    pad_factor = max(1.0, 8.0 / radix)   # radix < 8 sublanes gets padded
    limit = _vmem_limit(tg * row_bytes, tg * radix * ch, pad_factor)
    return pl.pallas_call(
        _radix_softmax_3d_kernel,
        out_shape=jax.ShapeDtypeStruct((g, radix, ch), xr.dtype),
        grid=(pl.cdiv(g, tg),),
        in_specs=[pl.BlockSpec((tg, radix, ch), lambda i: (i, 0, 0))],
        out_specs=pl.BlockSpec((tg, radix, ch), lambda i: (i, 0, 0)),
        compiler_params=pltpu.CompilerParams(
            dimension_semantics=("parallel",),
            vmem_limit_bytes=limit,
        ),
    )(xr)


def _sigmoid_call(x2):
    r, c = x2.shape
    itemsize = x2.dtype.itemsize
    # Tile the lane dim (multiple of 128) only if 8 full-width rows would
    # already exceed the block budget; otherwise keep the full width.
    if 8 * c * itemsize <= _TARGET_BLOCK_BYTES or c <= 128:
        tc = c
    else:
        tc = max(128, min(c, (_TARGET_BLOCK_BYTES // (8 * itemsize) // 128) * 128))
    row_bytes = tc * itemsize
    tr = _pick_row_tile(r, row_bytes)
    limit = _vmem_limit(tr * row_bytes, tr * tc)
    return pl.pallas_call(
        _sigmoid_kernel,
        out_shape=jax.ShapeDtypeStruct((r, c), x2.dtype),
        grid=(pl.cdiv(r, tr), pl.cdiv(c, tc)),
        in_specs=[pl.BlockSpec((tr, tc), lambda i, j: (i, j))],
        out_specs=pl.BlockSpec((tr, tc), lambda i, j: (i, j)),
        compiler_params=pltpu.CompilerParams(
            dimension_semantics=("parallel", "parallel"),
            vmem_limit_bytes=limit,
        ),
    )(x2)


def radix_softmax(x, radix, cardinality):
    """Forward of v2x-vit RadixSoftmax.

    x: (batch, cav_num, *rest). Returns (batch, -1) if radix > 1,
    otherwise sigmoid(x) with the original shape. bf16 in/out supported
    (compute is f32 inside the kernels).
    """
    batch = x.shape[0]
    cav_num = x.shape[1]
    if radix > 1:
        feat = math.prod(x.shape[2:]) if x.ndim > 2 else 1
        assert feat % (cardinality * radix) == 0, "feature dim not divisible"
        ch = feat // (cardinality * radix)
        groups = batch * cav_num * cardinality
        if ch % 128 == 0:
            # Free view: same memory order as torch .view(B,cav,card,radix,-1).
            x2 = x.reshape(groups, radix * ch)
            out = _radix_softmax_call_2d(x2, radix, ch)
        else:
            xr = x.reshape(groups, radix, ch)
            out = _radix_softmax_call_3d(xr)
        return out.reshape(batch, -1)
    else:
        rest = math.prod(x.shape[1:]) if x.ndim > 1 else 1
        x2 = x.reshape(batch, rest)
        out = _sigmoid_call(x2)
        return out.reshape(x.shape)


# ----------------------------------------------------------------------------
# Pure-JAX reference
# ----------------------------------------------------------------------------
def radix_softmax_ref(x, radix, cardinality):
    batch, cav_num = x.shape[0], x.shape[1]
    if radix > 1:
        feat = math.prod(x.shape[2:]) if x.ndim > 2 else 1
        ch = feat // (cardinality * radix)
        xr = x.reshape(batch, cav_num, cardinality, radix, ch)
        y = jax.nn.softmax(xr, axis=3)
        return y.reshape(batch, -1)
    else:
        return jax.nn.sigmoid(x)


# ----------------------------------------------------------------------------
# Demo / self-test
# ----------------------------------------------------------------------------
if __name__ == "__main__":
    key = jax.random.PRNGKey(0)
    k0, k1, k2, k3 = jax.random.split(key, 4)

    # Tolerance relaxed because divides use pl.reciprocal(approx=True).
    TOL = dict(rtol=5e-3, atol=5e-3)

    # 1) radix > 1, lane-dense fast path (ch = 128): batch=2, cav=3, card=2, radix=4
    batch, cav_num, cardinality, radix, ch = 2, 3, 2, 4, 128
    feat = cardinality * radix * ch
    x = jax.random.normal(k0, (batch, cav_num, feat), dtype=jnp.float32)
    out = radix_softmax(x, radix, cardinality)
    jax.block_until_ready(out)
    ref = radix_softmax_ref(x, radix, cardinality)
    assert out.shape == (batch, cav_num * feat), out.shape
    assert jnp.allclose(out, ref, **TOL), "softmax (lane-dense) mismatch"

    # 2) radix > 1, 3-D fallback path (ch = 96, not a multiple of 128).
    ch_f = 96
    feat_f = cardinality * radix * ch_f
    xf = jax.random.normal(k1, (batch, cav_num, feat_f), dtype=jnp.float32)
    outf = radix_softmax(xf, radix, cardinality)
    jax.block_until_ready(outf)
    reff = radix_softmax_ref(xf, radix, cardinality)
    assert outf.shape == (batch, cav_num * feat_f), outf.shape
    assert jnp.allclose(outf, reff, **TOL), "softmax (3-D fallback) mismatch"

    # 3) radix == 1 path: sigmoid, original shape preserved.
    x1 = jax.random.normal(k2, (2, 3, 128), dtype=jnp.float32)
    out1 = radix_softmax(x1, 1, cardinality)
    jax.block_until_ready(out1)
    ref1 = radix_softmax_ref(x1, 1, cardinality)
    assert out1.shape == x1.shape, out1.shape
    assert jnp.allclose(out1, ref1, **TOL), "sigmoid path mismatch"

    # 4) bf16 end-to-end on the softmax path (HBM-bound op -> ~2x traffic win).
    xb = jax.random.normal(k3, (batch, cav_num, feat), dtype=jnp.float32)
    outb = radix_softmax(xb.astype(jnp.bfloat16), radix, cardinality)
    jax.block_until_ready(outb)
    refb = radix_softmax_ref(xb.astype(jnp.bfloat16).astype(jnp.float32),
                             radix, cardinality)
    assert outb.dtype == jnp.bfloat16
    assert jnp.allclose(outb.astype(jnp.float32), refb, rtol=2e-2, atol=2e-2), \
        "bf16 softmax path mismatch"

    print("KERNEL_OK")
</pallas_src>

<mosaic_0001>
module attributes {stable_mosaic.version = 11 : i64} {
  func.func @_radix_softmax_lane_kernel(%arg0: i32, %arg1: memref<12x512xf32, #tpu.memory_space<vmem>>, %arg2: memref<12x512xf32, #tpu.memory_space<vmem>>) attributes {dimension_semantics = [#tpu.dimension_semantics<parallel>], iteration_bounds = array<i64: 1>, scalar_prefetch = 0 : i64, scratch_operands = 0 : i64, tpu.core_type = #tpu.core_type<tc>, window_params = [{transform_indices = @transform_0, window_bounds = array<i64: 12, 512>}, {transform_indices = @transform_1, window_bounds = array<i64: 12, 512>}]} {
    %c0 = arith.constant 0 : index
    %c0_0 = arith.constant 0 : index
    %0 = vector.load %arg1[%c0, %c0_0] : memref<12x512xf32, #tpu.memory_space<vmem>>, vector<12x512xf32>
    %1 = vector.extract_strided_slice %0 {offsets = [0, 0], sizes = [12, 128], strides = [1, 1]} : vector<12x512xf32> to vector<12x128xf32>
    %2 = vector.extract_strided_slice %0 {offsets = [0, 128], sizes = [12, 128], strides = [1, 1]} : vector<12x512xf32> to vector<12x128xf32>
    %3 = arith.maximumf %1, %2 : vector<12x128xf32>
    %4 = vector.extract_strided_slice %0 {offsets = [0, 256], sizes = [12, 128], strides = [1, 1]} : vector<12x512xf32> to vector<12x128xf32>
    %5 = arith.maximumf %3, %4 : vector<12x128xf32>
    %6 = vector.extract_strided_slice %0 {offsets = [0, 384], sizes = [12, 128], strides = [1, 1]} : vector<12x512xf32> to vector<12x128xf32>
    %7 = arith.maximumf %5, %6 : vector<12x128xf32>
    %8 = vector.extract_strided_slice %0 {offsets = [0, 0], sizes = [12, 128], strides = [1, 1]} : vector<12x512xf32> to vector<12x128xf32>
    %9 = arith.subf %8, %7 : vector<12x128xf32>
    %10 = math.exp %9 : vector<12x128xf32>
    %11 = vector.extract_strided_slice %0 {offsets = [0, 128], sizes = [12, 128], strides = [1, 1]} : vector<12x512xf32> to vector<12x128xf32>
    %12 = arith.subf %11, %7 : vector<12x128xf32>
    %13 = math.exp %12 : vector<12x128xf32>
    %14 = arith.addf %10, %13 : vector<12x128xf32>
    %15 = vector.extract_strided_slice %0 {offsets = [0, 256], sizes = [12, 128], strides = [1, 1]} : vector<12x512xf32> to vector<12x128xf32>
    %16 = arith.subf %15, %7 : vector<12x128xf32>
    %17 = math.exp %16 : vector<12x128xf32>
    %18 = arith.addf %14, %17 : vector<12x128xf32>
    %19 = vector.extract_strided_slice %0 {offsets = [0, 384], sizes = [12, 128], strides = [1, 1]} : vector<12x512xf32> to vector<12x128xf32>
    %20 = arith.subf %19, %7 : vector<12x128xf32>
    %21 = math.exp %20 : vector<12x128xf32>
    %22 = arith.addf %18, %21 : vector<12x128xf32>
    %23 = tpu.reciprocal %22 {approx = true} : vector<12x128xf32> -> vector<12x128xf32>
    %24 = arith.mulf %10, %23 : vector<12x128xf32>
    %25 = arith.mulf %13, %23 : vector<12x128xf32>
    %26 = arith.mulf %17, %23 : vector<12x128xf32>
    %27 = arith.mulf %21, %23 : vector<12x128xf32>
    %28 = tpu.concatenate %24, %25, %26, %27 in 1 : vector<12x128xf32>, vector<12x128xf32>, vector<12x128xf32>, vector<12x128xf32> -> vector<12x512xf32>
    %c0_1 = arith.constant 0 : index
    %c0_2 = arith.constant 0 : index
    %29 = vector.load %arg2[%c0_1, %c0_2] : memref<12x512xf32, #tpu.memory_space<vmem>>, vector<12x512xf32>
    tpu.vector_store %arg2[%c0_1, %c0_2], %28 {strides = array<i32>} : memref<12x512xf32, #tpu.memory_space<vmem>>, vector<12x512xf32>,
    return
  }
  func.func @transform_0(%arg0: i32) -> (i32, i32) {
    %c0_i32 = arith.constant 0 : i32
    %c0_i32_0 = arith.constant 0 : i32
    return %arg0, %c0_i32 : i32, i32
  }
  func.func @transform_1(%arg0: i32) -> (i32, i32) {
    %c0_i32 = arith.constant 0 : i32
    %c0_i32_0 = arith.constant 0 : i32
    return %arg0, %c0_i32 : i32, i32
  }
}

</mosaic_0001>

<llo_original>
// kernel: tpu_custom_call.1
$region0: #{tpu_custom_call.1}
  #allocation0 [shape = 'u32[]', space=smem, size = 0x4, offset = 0x4, fixed_abs, tag = 'smem constant byte address 0x4 - core index']
  #allocation1 [shape = 'u32[144,128]{1,0:T(1,128)}', space=vmem, size = 0x12000, scoped, tag = 'internal scratch']
  %s0 = inlined_call_operand.hbm [shape: f32[12,512], index: 0, kind: input, shape index: {}]
  %s1 = inlined_call_operand.hbm [shape: f32[12,512], index: 1, kind: output, shape index: {}]
  %s2 = sld [smem:[#allocation0]]
  $region18: #{tpu_custom_call.1} parent=0
    _
  %s4 = ssub.s32 1, %s2
  %s5 = scalar_select 0, %s4, %s2
  $region1: #{tpu_custom_call.1} parent=0
    #allocation2 [shape = 'u8[32768]{0}', space=vmem, size = 0x8000, scoped, tag = 'input window, operand 0, single buffered']
    #allocation3 [shape = 's32[1]{0}', space=sflag, size = 0x4, scoped, tag = 'scoped memory for tpu_custom_call.1']
    #allocation4 [shape = 's32[1]{0}', space=sflag, size = 0x4, scoped, tag = 'scoped memory for tpu_custom_call.1']
    #allocation5 [shape = 'u8[32768]{0}', space=vmem, size = 0x8000, scoped, tag = 'output window, operand 0, single buffered']
    %6 = vsyncpa [#allocation3], 0
    %7 = vsyncpa [#allocation4], 0
    // Predicated region
    $region2: #{tpu_custom_call.1} parent=1 // pred_check
      _
    $region3: #{tpu_custom_call.1} parent=1 // pred_check_branch
      %9 = sbr.rel (0) target = $region5
    $region4: #{tpu_custom_call.1} parent=1 // pred_region
      %s11 = ssub.s32 1024, 1024
      %12 = vsyncadd [#allocation3], %s11
      %s13 = sshll.u32 [#allocation2], 4
      %s14 = int_to_ptr.vmem [resolvable:$true] %s13
      %19 = dma.hbm_to_vmem [thread:$0]  %s0, 1024, %s14, [#allocation3], 512, 512, 32
    $region5: #{tpu_custom_call.1} parent=1 // pred_fallthru
      _
    // Predicated region
    $region6: #{tpu_custom_call.1} parent=1 // pred_check
      _
    $region7: #{tpu_custom_call.1} parent=1 // pred_check_branch
      %21 = sbr.rel (0) target = $region9
    $region8: #{tpu_custom_call.1} parent=1 // pred_region
      %22 = dma.done [#allocation3], 1024
    $region9: #{tpu_custom_call.1} parent=1 // pred_fallthru
      _
    %v23 = vld [vmem:[#allocation2] sm:$0xff]
    %v24 = vld [vmem:[#allocation2 + $0x8] sm:$0xff]
    %v25 = vld [vmem:[#allocation2 + $0x10] sm:$0xff]
    %v26 = vld [vmem:[#allocation2 + $0x18] sm:$0xff]
    %v27 = vld [vmem:[#allocation2 + $0x20] sm:$0xf]
    %v28 = vld [vmem:[#allocation2 + $0x28] sm:$0xf]
    %v29 = vld [vmem:[#allocation2 + $0x30] sm:$0xf]
    %v30 = vld [vmem:[#allocation2 + $0x38] sm:$0xf]
    %v31 = vmax.f32 %v23, %v24
    %v32 = vmax.f32 %v27, %v28
    %v33 = vmax.f32 %v31, %v25
    %v34 = vmax.f32 %v32, %v29
    %v35 = vmax.f32 %v33, %v26
    %v36 = vmax.f32 %v34, %v30
    %v37 = vsub.f32 %v23, %v35
    %v38 = vsub.f32 %v27, %v36
    %v39 = vmul.f32 %v37, 1.442695
    %v40 = vpow.pop %v39
    %v41 = vmul.f32 %v38, 1.442695
    %v42 = vpow.pop %v41
    %v43 = vsub.f32 %v24, %v35
    %v44 = vsub.f32 %v28, %v36
    %v45 = vmul.f32 %v43, 1.442695
    %v46 = vpow.pop %v45
    %v47 = vmul.f32 %v44, 1.442695
    %v48 = vpow.pop %v47
    %v49 = vadd.f32 %v40, %v46
    %v50 = vadd.f32 %v42, %v48
    %v51 = vsub.f32 %v25, %v35
    %v52 = vsub.f32 %v29, %v36
    %v53 = vmul.f32 %v51, 1.442695
    %v54 = vpow.pop %v53
    %v55 = vmul.f32 %v52, 1.442695
    %v56 = vpow.pop %v55
    %v57 = vadd.f32 %v49, %v54
    %v58 = vadd.f32 %v50, %v56
    %v59 = vsub.f32 %v26, %v35
    %v60 = vsub.f32 %v30, %v36
    %v61 = vmul.f32 %v59, 1.442695
    %v62 = vpow.pop %v61
    %v63 = vmul.f32 %v60, 1.442695
    %v64 = vpow.pop %v63
    %v65 = vadd.f32 %v57, %v62
    %v66 = vadd.f32 %v58, %v64
    %v67 = vrcp.pop %v65
    %v68 = vrcp.pop %v66
    %v69 = vmul.f32 %v40, %v67
    %v70 = vmul.f32 %v42, %v68
    %v71 = vmul.f32 %v46, %v67
    %v72 = vmul.f32 %v48, %v68
    %v73 = vmul.f32 %v54, %v67
    %v74 = vmul.f32 %v56, %v68
    %v75 = vmul.f32 %v62, %v67
    %v76 = vmul.f32 %v64, %v68
    %77 = vst [vmem:[#allocation5] sm:$0xff] %v69
    %78 = vst [vmem:[#allocation5 + $0x8] sm:$0xff] %v71
    %79 = vst [vmem:[#allocation5 + $0x10] sm:$0xff] %v73
    %80 = vst [vmem:[#allocation5 + $0x18] sm:$0xff] %v75
    %81 = vst [vmem:[#allocation5 + $0x20] sm:$0xf] %v70
    %82 = vst [vmem:[#allocation5 + $0x28] sm:$0xf] %v72
    %83 = vst [vmem:[#allocation5 + $0x30] sm:$0xf] %v74
    %84 = vst [vmem:[#allocation5 + $0x38] sm:$0xf] %v76
    // Predicated region
    $region10: #{tpu_custom_call.1} parent=1 // pred_check
      _
    $region11: #{tpu_custom_call.1} parent=1 // pred_check_branch
      %86 = sbr.rel (0) target = $region13
    $region12: #{tpu_custom_call.1} parent=1 // pred_region
      %s88 = ssub.s32 1024, 1024
      %89 = vsyncadd [#allocation4], %s88
      %s90 = sshll.u32 [#allocation5], 4
      %s91 = int_to_ptr.vmem [resolvable:$true] %s90
      %96 = dma.vmem_to_hbm [thread:$0]  %s91, 1024, %s1, [#allocation4], 512, 512, 32
    $region13: #{tpu_custom_call.1} parent=1 // pred_fallthru
      _
    // Predicated region
    $region14: #{tpu_custom_call.1} parent=1 // pred_check
      _
    $region15: #{tpu_custom_call.1} parent=1 // pred_check_branch
      %98 = sbr.rel (0) target = $region17
    $region16: #{tpu_custom_call.1} parent=1 // pred_region
      %99 = dma.done [#allocation4], 1024
    $region17: #{tpu_custom_call.1} parent=1 // pred_fallthru
      _
    %100 = vsyncpa [#allocation3], 1
    %101 = vsyncpa [#allocation4], 1

</llo_original>
